<compile_context>
chip_gen: v7x
topology: tpu7x:2x2x1
jax: 0.10.0
libtpu: 0.0.40
codegen_flags: <defaults>
</compile_context>

<pallas_src>
import jax
import jax.numpy as jnp
from jax.experimental import pallas as pl
from jax.experimental.pallas import tpu as pltpu

LN_EPS = 1e-5  # PyTorch nn.LayerNorm default eps


def _round_up(n, m):
    return ((n + m - 1) // m) * m


def _vme_kernel(xt_ref, w1t_ref, b1_ref, w2t_ref, b2_ref, gamma_ref, beta_ref,
                o_ref):
    # ---- encoder: Linear -> ReLU -> Linear (batch on lanes) ---------------
    xt = xt_ref[...]                                           # [ni, TM] f32
    h = jnp.dot(w1t_ref[...], xt,
                preferred_element_type=jnp.float32) + b1_ref[...]   # [fc, TM]
    h = jnp.maximum(h, 0.0)                                    # lane-dense ReLU
    y = jnp.dot(w2t_ref[...], h,
                preferred_element_type=jnp.float32) + b2_ref[...]   # [od, TM]

    # ---- norm: LayerNorm over out_dims (axis 0) -> Tanh -------------------
    # Stats are [1, TM]: lane-dense mean/var VALU work and ~TM/128 rsqrt EUP
    # pushes per tile.  Two-pass variance matches PyTorch semantics.
    inv_n = 1.0 / y.shape[0]
    mean = jnp.sum(y, axis=0, keepdims=True) * inv_n           # [1, TM]
    c = y - mean                                               # [od, TM]
    var = jnp.sum(c * c, axis=0, keepdims=True) * inv_n        # [1, TM]
    inv_std = jax.lax.rsqrt(var + LN_EPS)                      # [1, TM] EUP
    out = jnp.tanh(c * inv_std * gamma_ref[...] + beta_ref[...])   # [od, TM]

    o_ref[...] = out.astype(o_ref.dtype)                       # lane-dense vst


def vehicle_measurements_encoder(x, w1, b1, w2, b2, gamma, beta, *,
                                 block_m=2048, core_parallel=False):
    """x: [B, num_inputs] f32 -> [B, out_dims] f32.

    w1: [num_inputs, fc_dims], b1: [fc_dims]
    w2: [fc_dims, out_dims],   b2: [out_dims]
    gamma, beta: [out_dims]    (LayerNorm affine)
    core_parallel: set True on v7x (2 TensorCores/chip) to shard the batch
    grid across cores; leave False on single-core v5e/v6e.
    """
    B, num_inputs = x.shape
    fc_dims = w1.shape[1]
    out_dims = w2.shape[1]

    # Batch tile = lane dimension -> must be a multiple of 128.
    block_m = _round_up(block_m, 128)
    tm = min(block_m, _round_up(B, 128))
    B_pad = _round_up(B, tm)

    # Layout plumbing (wrapper side): batch on lanes, params as column vectors.
    xt = x.T                                              # [num_inputs, B]
    if B_pad != B:
        xt = jnp.pad(xt, ((0, 0), (0, B_pad - B)))
    w1t = w1.T                                            # [fc_dims, num_inputs]
    w2t = w2.T                                            # [out_dims, fc_dims]
    b1c = b1.reshape(fc_dims, 1)
    b2c = b2.reshape(out_dims, 1)
    gammac = gamma.reshape(out_dims, 1)
    betac = beta.reshape(out_dims, 1)

    grid = (B_pad // tm,)

    # Constant index_map -> VMEM-resident across all grid steps.
    resident = lambda shape: pl.BlockSpec(shape, lambda i: (0,) * len(shape))

    flops = 2 * B_pad * (num_inputs * fc_dims + fc_dims * out_dims)
    bytes_accessed = 4 * (
        B_pad * (num_inputs + out_dims)               # stream x in, out out
        + num_inputs * fc_dims + fc_dims * out_dims   # weights (once)
        + fc_dims + 3 * out_dims                      # biases + LN affine
    )
    transcendentals = B_pad * (out_dims + 1)          # tanh per elem + rsqrt per row

    batch_sem = pltpu.CORE_PARALLEL if core_parallel else pltpu.PARALLEL

    out_t = pl.pallas_call(
        _vme_kernel,
        out_shape=jax.ShapeDtypeStruct((out_dims, B_pad), jnp.float32),
        grid=grid,
        in_specs=[
            pl.BlockSpec((num_inputs, tm), lambda i: (0, i)),   # streamed x^T
            resident(w1t.shape),
            resident(b1c.shape),
            resident(w2t.shape),
            resident(b2c.shape),
            resident(gammac.shape),
            resident(betac.shape),
        ],
        out_specs=pl.BlockSpec((out_dims, tm), lambda i: (0, i)),  # lane-dense
        compiler_params=pltpu.CompilerParams(
            dimension_semantics=(batch_sem,),
            vmem_limit_bytes=32 * 1024 * 1024),
        cost_estimate=pl.CostEstimate(
            flops=flops,
            bytes_accessed=bytes_accessed,
            transcendentals=transcendentals),
    )(xt, w1t, b1c, w2t, b2c, gammac, betac)

    out = out_t.T                                     # [B_pad, out_dims]
    return out[:B] if B_pad != B else out


def init_params(key, num_inputs, fc_dims, out_dims):
    """Deterministic synthetic init (stands in for weights_init / checkpoint)."""
    k1, k2, k3, k4 = jax.random.split(key, 4)
    w1 = jax.random.normal(k1, (num_inputs, fc_dims), jnp.float32) * (1.0 / jnp.sqrt(num_inputs))
    b1 = jax.random.normal(k2, (fc_dims,), jnp.float32) * 0.01
    w2 = jax.random.normal(k3, (fc_dims, out_dims), jnp.float32) * (1.0 / jnp.sqrt(fc_dims))
    b2 = jax.random.normal(k4, (out_dims,), jnp.float32) * 0.01
    gamma = jnp.ones((out_dims,), jnp.float32)    # LayerNorm weight
    beta = jnp.zeros((out_dims,), jnp.float32)    # LayerNorm bias
    return w1, b1, w2, b2, gamma, beta


def _reference(x, w1, b1, w2, b2, gamma, beta):
    # Pure-f32 reference (PyTorch semantics).
    h = jnp.maximum(x @ w1 + b1, 0.0)
    y = h @ w2 + b2
    mean = jnp.mean(y, axis=-1, keepdims=True)
    var = jnp.mean((y - mean) ** 2, axis=-1, keepdims=True)
    return jnp.tanh((y - mean) * jax.lax.rsqrt(var + LN_EPS) * gamma + beta)


if __name__ == "__main__":
    key = jax.random.PRNGKey(0)
    kx, kp, kx2 = jax.random.split(key, 3)

    num_inputs, fc_dims, out_dims = 16, 64, 32
    params = init_params(kp, num_inputs, fc_dims, out_dims)

    # Case 1: multi-step batch grid (2 lane tiles of 128 rows).
    B = 256
    x = jax.random.normal(kx, (B, num_inputs), jnp.float32)
    out = jax.block_until_ready(
        vehicle_measurements_encoder(x, *params, block_m=128))
    ref = _reference(x, *params)
    assert out.shape == (B, out_dims)
    assert jnp.allclose(out, ref, atol=1e-2, rtol=0.0), float(jnp.max(jnp.abs(out - ref)))

    # Case 2: ragged small batch (exercises pad-to-lane-tile + slice path).
    B2 = 10
    x2 = jax.random.normal(kx2, (B2, num_inputs), jnp.float32)
    out2 = jax.block_until_ready(vehicle_measurements_encoder(x2, *params))
    ref2 = _reference(x2, *params)
    assert out2.shape == (B2, out_dims)
    assert jnp.allclose(out2, ref2, atol=1e-2, rtol=0.0), float(jnp.max(jnp.abs(out2 - ref2)))

    print("KERNEL_OK")
</pallas_src>

<mosaic_0001>
module attributes {stable_mosaic.version = 11 : i64} {
  func.func @_vme_kernel(%arg0: i32, %arg1: memref<16x128xf32, #tpu.memory_space<vmem>>, %arg2: memref<64x16xf32, #tpu.memory_space<vmem>>, %arg3: memref<64x1xf32, #tpu.memory_space<vmem>>, %arg4: memref<32x64xf32, #tpu.memory_space<vmem>>, %arg5: memref<32x1xf32, #tpu.memory_space<vmem>>, %arg6: memref<32x1xf32, #tpu.memory_space<vmem>>, %arg7: memref<32x1xf32, #tpu.memory_space<vmem>>, %arg8: memref<32x128xf32, #tpu.memory_space<vmem>>) attributes {dimension_semantics = [#tpu.dimension_semantics<parallel>], iteration_bounds = array<i64: 2>, scalar_prefetch = 0 : i64, scratch_operands = 0 : i64, tpu.core_type = #tpu.core_type<tc>, window_params = [{transform_indices = @transform_0, window_bounds = array<i64: 16, 128>}, {pipeline_mode = #tpu.pipeline_mode<synchronous>, transform_indices = @transform_1, window_bounds = array<i64: 64, 16>}, {pipeline_mode = #tpu.pipeline_mode<synchronous>, transform_indices = @transform_2, window_bounds = array<i64: 64, 1>}, {pipeline_mode = #tpu.pipeline_mode<synchronous>, transform_indices = @transform_3, window_bounds = array<i64: 32, 64>}, {pipeline_mode = #tpu.pipeline_mode<synchronous>, transform_indices = @transform_4, window_bounds = array<i64: 32, 1>}, {pipeline_mode = #tpu.pipeline_mode<synchronous>, transform_indices = @transform_5, window_bounds = array<i64: 32, 1>}, {pipeline_mode = #tpu.pipeline_mode<synchronous>, transform_indices = @transform_6, window_bounds = array<i64: 32, 1>}, {transform_indices = @transform_7, window_bounds = array<i64: 32, 128>}]} {
    %c0 = arith.constant 0 : index
    %c0_0 = arith.constant 0 : index
    %0 = vector.load %arg1[%c0, %c0_0] : memref<16x128xf32, #tpu.memory_space<vmem>>, vector<16x128xf32>
    %c0_1 = arith.constant 0 : index
    %c0_2 = arith.constant 0 : index
    %1 = vector.load %arg2[%c0_1, %c0_2] : memref<64x16xf32, #tpu.memory_space<vmem>>, vector<64x16xf32>
    %cst = arith.constant dense<0.000000e+00> : vector<64x128xf32>
    %2 = tpu.matmul %1, %0, %cst {dimension_numbers = #tpu.dot_dimension_numbers<[1], [0], [0], [1], [0, 0, 1, 1], [], []>} : vector<64x16xf32>, vector<16x128xf32>, vector<64x128xf32> -> vector<64x128xf32>
    %c0_3 = arith.constant 0 : index
    %c0_4 = arith.constant 0 : index
    %3 = vector.load %arg3[%c0_3, %c0_4] : memref<64x1xf32, #tpu.memory_space<vmem>>, vector<64x1xf32>
    %4 = vector.broadcast %3 : vector<64x1xf32> to vector<64x128xf32>
    %5 = arith.addf %2, %4 : vector<64x128xf32>
    %cst_5 = arith.constant 0.000000e+00 : f32
    %6 = vector.broadcast %cst_5 : f32 to vector<64x128xf32>
    %7 = arith.maximumf %5, %6 : vector<64x128xf32>
    %c0_6 = arith.constant 0 : index
    %c0_7 = arith.constant 0 : index
    %8 = vector.load %arg4[%c0_6, %c0_7] : memref<32x64xf32, #tpu.memory_space<vmem>>, vector<32x64xf32>
    %cst_8 = arith.constant dense<0.000000e+00> : vector<32x128xf32>
    %9 = tpu.matmul %8, %7, %cst_8 {dimension_numbers = #tpu.dot_dimension_numbers<[1], [0], [0], [1], [0, 0, 1, 1], [], []>} : vector<32x64xf32>, vector<64x128xf32>, vector<32x128xf32> -> vector<32x128xf32>
    %c0_9 = arith.constant 0 : index
    %c0_10 = arith.constant 0 : index
    %10 = vector.load %arg5[%c0_9, %c0_10] : memref<32x1xf32, #tpu.memory_space<vmem>>, vector<32x1xf32>
    %11 = vector.broadcast %10 : vector<32x1xf32> to vector<32x128xf32>
    %12 = arith.addf %9, %11 : vector<32x128xf32>
    %cst_11 = arith.constant dense<0.000000e+00> : vector<128xf32>
    %13 = vector.multi_reduction <add>, %12, %cst_11 [0] : vector<32x128xf32> to vector<128xf32>
    %14 = vector.shape_cast %13 : vector<128xf32> to vector<1x128xf32>
    %cst_12 = arith.constant 3.125000e-02 : f32
    %15 = vector.broadcast %cst_12 : f32 to vector<1x128xf32>
    %16 = arith.mulf %14, %15 : vector<1x128xf32>
    %17 = vector.broadcast %16 : vector<1x128xf32> to vector<32x128xf32>
    %18 = arith.subf %12, %17 : vector<32x128xf32>
    %19 = arith.mulf %18, %18 : vector<32x128xf32>
    %cst_13 = arith.constant dense<0.000000e+00> : vector<128xf32>
    %20 = vector.multi_reduction <add>, %19, %cst_13 [0] : vector<32x128xf32> to vector<128xf32>
    %21 = vector.shape_cast %20 : vector<128xf32> to vector<1x128xf32>
    %cst_14 = arith.constant 3.125000e-02 : f32
    %22 = vector.broadcast %cst_14 : f32 to vector<1x128xf32>
    %23 = arith.mulf %21, %22 : vector<1x128xf32>
    %cst_15 = arith.constant 9.99999974E-6 : f32
    %24 = vector.broadcast %cst_15 : f32 to vector<1x128xf32>
    %25 = arith.addf %23, %24 : vector<1x128xf32>
    %26 = math.rsqrt %25 : vector<1x128xf32>
    %27 = vector.broadcast %26 : vector<1x128xf32> to vector<32x128xf32>
    %28 = arith.mulf %18, %27 : vector<32x128xf32>
    %c0_16 = arith.constant 0 : index
    %c0_17 = arith.constant 0 : index
    %29 = vector.load %arg6[%c0_16, %c0_17] : memref<32x1xf32, #tpu.memory_space<vmem>>, vector<32x1xf32>
    %30 = vector.broadcast %29 : vector<32x1xf32> to vector<32x128xf32>
    %31 = arith.mulf %28, %30 : vector<32x128xf32>
    %c0_18 = arith.constant 0 : index
    %c0_19 = arith.constant 0 : index
    %32 = vector.load %arg7[%c0_18, %c0_19] : memref<32x1xf32, #tpu.memory_space<vmem>>, vector<32x1xf32>
    %33 = vector.broadcast %32 : vector<32x1xf32> to vector<32x128xf32>
    %34 = arith.addf %31, %33 : vector<32x128xf32>
    %35 = math.tanh %34 : vector<32x128xf32>
    %c0_20 = arith.constant 0 : index
    %c0_21 = arith.constant 0 : index
    %36 = vector.load %arg8[%c0_20, %c0_21] : memref<32x128xf32, #tpu.memory_space<vmem>>, vector<32x128xf32>
    tpu.vector_store %arg8[%c0_20, %c0_21], %35 {strides = array<i32>} : memref<32x128xf32, #tpu.memory_space<vmem>>, vector<32x128xf32>,
    return
  }
  func.func @transform_0(%arg0: i32) -> (i32, i32) {
    %c0_i32 = arith.constant 0 : i32
    %c0_i32_0 = arith.constant 0 : i32
    return %c0_i32, %arg0 : i32, i32
  }
  func.func @transform_1(%arg0: i32) -> (i32, i32) {
    %c0_i32 = arith.constant 0 : i32
    %c0_i32_0 = arith.constant 0 : i32
    %c0_i32_1 = arith.constant 0 : i32
    return %c0_i32, %c0_i32_0 : i32, i32
  }
  func.func @transform_2(%arg0: i32) -> (i32, i32) {
    %c0_i32 = arith.constant 0 : i32
    %c0_i32_0 = arith.constant 0 : i32
    %c0_i32_1 = arith.constant 0 : i32
    return %c0_i32, %c0_i32_0 : i32, i32
  }
  func.func @transform_3(%arg0: i32) -> (i32, i32) {
    %c0_i32 = arith.constant 0 : i32
    %c0_i32_0 = arith.constant 0 : i32
    %c0_i32_1 = arith.constant 0 : i32
    return %c0_i32, %c0_i32_0 : i32, i32
  }
  func.func @transform_4(%arg0: i32) -> (i32, i32) {
    %c0_i32 = arith.constant 0 : i32
    %c0_i32_0 = arith.constant 0 : i32
    %c0_i32_1 = arith.constant 0 : i32
    return %c0_i32, %c0_i32_0 : i32, i32
  }
  func.func @transform_5(%arg0: i32) -> (i32, i32) {
    %c0_i32 = arith.constant 0 : i32
    %c0_i32_0 = arith.constant 0 : i32
    %c0_i32_1 = arith.constant 0 : i32
    return %c0_i32, %c0_i32_0 : i32, i32
  }
  func.func @transform_6(%arg0: i32) -> (i32, i32) {
    %c0_i32 = arith.constant 0 : i32
    %c0_i32_0 = arith.constant 0 : i32
    %c0_i32_1 = arith.constant 0 : i32
    return %c0_i32, %c0_i32_0 : i32, i32
  }
  func.func @transform_7(%arg0: i32) -> (i32, i32) {
    %c0_i32 = arith.constant 0 : i32
    %c0_i32_0 = arith.constant 0 : i32
    return %c0_i32, %arg0 : i32, i32
  }
}

</mosaic_0001>

<llo_original>
// kernel: tpu_custom_call.1
$region0: #{tpu_custom_call.1}
  #allocation0 [shape = 'u32[]', space=smem, size = 0x4, offset = 0x4, fixed_abs, tag = 'smem constant byte address 0x4 - core index']
  #allocation1 [shape = 'u32[144,128]{1,0:T(1,128)}', space=vmem, size = 0x12000, scoped, tag = 'internal scratch']
  %s0 = inlined_call_operand.vmem [shape: f32[16,256], index: 0, kind: input, shape index: {}]
  %s1 = inlined_call_operand.vmem [shape: f32[64,16], index: 1, kind: input, shape index: {}]
  %s2 = inlined_call_operand.vmem [shape: f32[64,1], index: 2, kind: input, shape index: {}]
  %s3 = inlined_call_operand.vmem [shape: f32[32,64], index: 3, kind: input, shape index: {}]
  %s4 = inlined_call_operand.vmem [shape: f32[32,1], index: 4, kind: input, shape index: {}]
  %s5 = inlined_call_operand.vmem [shape: f32[32,1], index: 5, kind: input, shape index: {}]
  %s6 = inlined_call_operand.vmem [shape: f32[32,1], index: 6, kind: input, shape index: {}]
  %s7 = inlined_call_operand.hbm [shape: f32[32,256], index: 7, kind: output, shape index: {}]
  %s8 = sld [smem:[#allocation0]]
  $region99: #{tpu_custom_call.1} parent=0
    _
  %s10 = ssub.s32 1, %s8
  %s11 = scalar_select 0, %s10, %s8
  $region1: #{tpu_custom_call.1} parent=0
    #allocation2 [shape = 'u8[16384]{0}', space=vmem, size = 0x4000, scoped, tag = 'input window, operand 0']
    #allocation3 [shape = 'u8[32768]{0}', space=vmem, size = 0x8000, scoped, tag = 'output window, operand 0']
    #allocation4 [shape = 's32[2]{0}', space=sflag, size = 0x8, scoped, tag = 'scoped memory for tpu_custom_call.1']
    %12 = vsyncpa [#allocation4], 0
    %s13 = scalar_lea.sflag [#allocation4], 1
    %14 = vsyncpa %s13, 0
    loop: start=0, step=1, limit=4
    $region2: #{tpu_custom_call.1} parent=1 // loop_pre_header
      _
    $region3: #{tpu_custom_call.1} parent=1 // loop_header
      %s16 = sphi 0, %s20
      %p17 = scmp.ge.s32.totalorder %s16, 4
      %s26 = sphi 0, %s28
      %s29 = sphi 0, %s26
      %s30 = sphi 0, %s29
      %s46 = sphi 0, %s30
      %s50 = sphi 0, %s50
      %s52 = sphi 0, %s50
      %s53 = sphi 0, %s52
      %s67 = sphi 0, %s53
      %s71 = sphi 0, %s71
      %s73 = sphi 0, %s71
      %s74 = sphi 0, %s73
      %s88 = sphi 0, %s74
      %s92 = sphi 0, %s92
      %s94 = sphi 0, %s92
      %s95 = sphi 0, %s94
      %s109 = sphi 0, %s95
      %s113 = sphi 0, %s113
      %s115 = sphi 0, %s113
      %s116 = sphi 0, %s115
      %s130 = sphi 0, %s116
      %s134 = sphi 0, %s134
      %s136 = sphi 0, %s134
      %s137 = sphi 0, %s136
      %s151 = sphi 0, %s137
      %s155 = sphi 0, %s155
      %s157 = sphi 0, %s155
      %s158 = sphi 0, %s157
      %s172 = sphi 0, %s158
      %s178 = sphi 0, %s180
      %s181 = sphi 0, %s178
      %s182 = sphi 0, %s181
      %s198 = sphi 0, %s182
    $region4: #{tpu_custom_call.1} parent=1 // loop_header_branch
      %19 = sbr.rel (%p17) target = $region8
    $region5: #{tpu_custom_call.1} parent=1 // loop_body
      %s21 = ssub.s32 %s16, 1
      %s22 = ssub.s32 %s16, 2
      %s23 = sadd.s32 %s16, 1
      %s24 = ssub.s32 %s16, %s23
      %p25 = scmp.eq.s32.totalorder %s24, 0
      %s27 = sadd.s32 %s26, 1
      %s28 = scalar_select %p25, %s26, %s27
      %p31 = pneg %p25
      %p32 = scmp.eq.s32.totalorder %s16, 1
      %p33 = por %p31, %p32
      %p34 = scmp.ne.s32.totalorder %s26, %s29
      %p35 = scmp.eq.s32.totalorder %s16, 0
      %p36 = por %p34, %p35
      %p37 = scmp.ne.s32.totalorder %s26, %s29
      %p38 = scmp.eq.s32.totalorder %s21, 1
      %p39 = por %p37, %p38
      %p40 = scmp.ne.s32.totalorder %s29, %s30
      %p41 = scmp.eq.s32.totalorder %s21, 0
      %p42 = por %p40, %p41
      %p43 = scmp.ne.s32.totalorder %s29, %s30
      %p44 = scmp.eq.s32.totalorder %s22, 1
      %p45 = por %p43, %p44
      %p47 = scmp.ne.s32.totalorder %s30, %s46
      %p48 = scmp.eq.s32.totalorder %s22, 0
      %p49 = por %p47, %p48
      %s51 = sadd.s32 %s50, 1
      %p54 = scmp.eq.s32.totalorder %s16, 1
      %p55 = scmp.ne.s32.totalorder %s50, %s52
      %p56 = scmp.eq.s32.totalorder %s16, 0
      %p57 = por %p55, %p56
      %p58 = scmp.ne.s32.totalorder %s50, %s52
      %p59 = scmp.eq.s32.totalorder %s21, 1
      %p60 = por %p58, %p59
      %p61 = scmp.ne.s32.totalorder %s52, %s53
      %p62 = scmp.eq.s32.totalorder %s21, 0
      %p63 = por %p61, %p62
      %p64 = scmp.ne.s32.totalorder %s52, %s53
      %p65 = scmp.eq.s32.totalorder %s22, 1
      %p66 = por %p64, %p65
      %p68 = scmp.ne.s32.totalorder %s53, %s67
      %p69 = scmp.eq.s32.totalorder %s22, 0
      %p70 = por %p68, %p69
      %s72 = sadd.s32 %s71, 1
      %p75 = scmp.eq.s32.totalorder %s16, 1
      %p76 = scmp.ne.s32.totalorder %s71, %s73
      %p77 = scmp.eq.s32.totalorder %s16, 0
      %p78 = por %p76, %p77
      %p79 = scmp.ne.s32.totalorder %s71, %s73
      %p80 = scmp.eq.s32.totalorder %s21, 1
      %p81 = por %p79, %p80
      %p82 = scmp.ne.s32.totalorder %s73, %s74
      %p83 = scmp.eq.s32.totalorder %s21, 0
      %p84 = por %p82, %p83
      %p85 = scmp.ne.s32.totalorder %s73, %s74
      %p86 = scmp.eq.s32.totalorder %s22, 1
      %p87 = por %p85, %p86
      %p89 = scmp.ne.s32.totalorder %s74, %s88
      %p90 = scmp.eq.s32.totalorder %s22, 0
      %p91 = por %p89, %p90
      %s93 = sadd.s32 %s92, 1
      %p96 = scmp.eq.s32.totalorder %s16, 1
      %p97 = scmp.ne.s32.totalorder %s92, %s94
      %p98 = scmp.eq.s32.totalorder %s16, 0
      %p99 = por %p97, %p98
      %p100 = scmp.ne.s32.totalorder %s92, %s94
      %p101 = scmp.eq.s32.totalorder %s21, 1
      %p102 = por %p100, %p101
      %p103 = scmp.ne.s32.totalorder %s94, %s95
      %p104 = scmp.eq.s32.totalorder %s21, 0
      %p105 = por %p103, %p104
      %p106 = scmp.ne.s32.totalorder %s94, %s95
      %p107 = scmp.eq.s32.totalorder %s22, 1
      %p108 = por %p106, %p107
      %p110 = scmp.ne.s32.totalorder %s95, %s109
      %p111 = scmp.eq.s32.totalorder %s22, 0
      %p112 = por %p110, %p111
      %s114 = sadd.s32 %s113, 1
      %p117 = scmp.eq.s32.totalorder %s16, 1
      %p118 = scmp.ne.s32.totalorder %s113, %s115
      %p119 = scmp.eq.s32.totalorder %s16, 0
      %p120 = por %p118, %p119
      %p121 = scmp.ne.s32.totalorder %s113, %s115
      %p122 = scmp.eq.s32.totalorder %s21, 1
      %p123 = por %p121, %p122
      %p124 = scmp.ne.s32.totalorder %s115, %s116
      %p125 = scmp.eq.s32.totalorder %s21, 0
      %p126 = por %p124, %p125
      %p127 = scmp.ne.s32.totalorder %s115, %s116
      %p128 = scmp.eq.s32.totalorder %s22, 1
      %p129 = por %p127, %p128
      %p131 = scmp.ne.s32.totalorder %s116, %s130
      %p132 = scmp.eq.s32.totalorder %s22, 0
      %p133 = por %p131, %p132
      %s135 = sadd.s32 %s134, 1
      %p138 = scmp.eq.s32.totalorder %s16, 1
      %p139 = scmp.ne.s32.totalorder %s134, %s136
      %p140 = scmp.eq.s32.totalorder %s16, 0
      %p141 = por %p139, %p140
      %p142 = scmp.ne.s32.totalorder %s134, %s136
      %p143 = scmp.eq.s32.totalorder %s21, 1
      %p144 = por %p142, %p143
      %p145 = scmp.ne.s32.totalorder %s136, %s137
      %p146 = scmp.eq.s32.totalorder %s21, 0
      %p147 = por %p145, %p146
      %p148 = scmp.ne.s32.totalorder %s136, %s137
      %p149 = scmp.eq.s32.totalorder %s22, 1
      %p150 = por %p148, %p149
      %p152 = scmp.ne.s32.totalorder %s137, %s151
      %p153 = scmp.eq.s32.totalorder %s22, 0
      %p154 = por %p152, %p153
      %s156 = sadd.s32 %s155, 1
      %p159 = scmp.eq.s32.totalorder %s16, 1
      %p160 = scmp.ne.s32.totalorder %s155, %s157
      %p161 = scmp.eq.s32.totalorder %s16, 0
      %p162 = por %p160, %p161
      %p163 = scmp.ne.s32.totalorder %s155, %s157
      %p164 = scmp.eq.s32.totalorder %s21, 1
      %p165 = por %p163, %p164
      %p166 = scmp.ne.s32.totalorder %s157, %s158
      %p167 = scmp.eq.s32.totalorder %s21, 0
      %p168 = por %p166, %p167
      %p169 = scmp.ne.s32.totalorder %s157, %s158
      %p170 = scmp.eq.s32.totalorder %s22, 1
      %p171 = por %p169, %p170
      %p173 = scmp.ne.s32.totalorder %s158, %s172
      %p174 = scmp.eq.s32.totalorder %s22, 0
      %p175 = por %p173, %p174
      %s176 = ssub.s32 %s16, %s23
      %p177 = scmp.eq.s32.totalorder %s176, 0
      %s179 = sadd.s32 %s178, 1
      %s180 = scalar_select %p177, %s178, %s179
      %p183 = pneg %p177
      %p184 = scmp.eq.s32.totalorder %s16, 1
      %p185 = por %p183, %p184
      %p186 = scmp.ne.s32.totalorder %s178, %s181
      %p187 = scmp.eq.s32.totalorder %s16, 0
      %p188 = por %p186, %p187
      %p189 = scmp.ne.s32.totalorder %s178, %s181
      %p190 = scmp.eq.s32.totalorder %s21, 1
      %p191 = por %p189, %p190
      %p192 = scmp.ne.s32.totalorder %s181, %s182
      %p193 = scmp.eq.s32.totalorder %s21, 0
      %p194 = por %p192, %p193
      %p195 = scmp.ne.s32.totalorder %s181, %s182
      %p196 = scmp.eq.s32.totalorder %s22, 1
      %p197 = por %p195, %p196
      %p199 = scmp.ne.s32.totalorder %s182, %s198
      %p200 = scmp.eq.s32.totalorder %s22, 0
      %p201 = por %p199, %p200
      %p202 = scmp.le.s32.totalorder 1, %s16
      %p203 = scmp.lt.s32.totalorder %s16, 3
      %p204 = pnand %p202, %p203
      %p205 = pneg %p204
      // Predicated region
      $region9: #{tpu_custom_call.1} parent=5 // pred_check
        _
      $region10: #{tpu_custom_call.1} parent=5 // pred_check_branch
        %207 = sbr.rel (%p204) target = $region12
      $region11: #{tpu_custom_call.1} parent=5 // pred_region
        %s208 = ssub.s32 %s16, 1
        // Predicated region
        $region13: #{tpu_custom_call.1} parent=11 // pred_check
          %p209 = pneg %p63
        $region14: #{tpu_custom_call.1} parent=11 // pred_check_branch
          %211 = sbr.rel (%p209) target = $region16
        $region15: #{tpu_custom_call.1} parent=11 // pred_region
          _
        $region16: #{tpu_custom_call.1} parent=11 // pred_fallthru
          _
        // Predicated region
        $region17: #{tpu_custom_call.1} parent=11 // pred_check
          %p212 = pneg %p84
        $region18: #{tpu_custom_call.1} parent=11 // pred_check_branch
          %214 = sbr.rel (%p212) target = $region20
        $region19: #{tpu_custom_call.1} parent=11 // pred_region
          _
        $region20: #{tpu_custom_call.1} parent=11 // pred_fallthru
          _
        // Predicated region
        $region21: #{tpu_custom_call.1} parent=11 // pred_check
          %p215 = pneg %p105
        $region22: #{tpu_custom_call.1} parent=11 // pred_check_branch
          %217 = sbr.rel (%p215) target = $region24
        $region23: #{tpu_custom_call.1} parent=11 // pred_region
          _
        $region24: #{tpu_custom_call.1} parent=11 // pred_fallthru
          _
        // Predicated region
        $region25: #{tpu_custom_call.1} parent=11 // pred_check
          %p218 = pneg %p126
        $region26: #{tpu_custom_call.1} parent=11 // pred_check_branch
          %220 = sbr.rel (%p218) target = $region28
        $region27: #{tpu_custom_call.1} parent=11 // pred_region
          _
        $region28: #{tpu_custom_call.1} parent=11 // pred_fallthru
          _
        // Predicated region
        $region29: #{tpu_custom_call.1} parent=11 // pred_check
          %p221 = pneg %p147
        $region30: #{tpu_custom_call.1} parent=11 // pred_check_branch
          %223 = sbr.rel (%p221) target = $region32
        $region31: #{tpu_custom_call.1} parent=11 // pred_region
          _
        $region32: #{tpu_custom_call.1} parent=11 // pred_fallthru
          _
        // Predicated region
        $region33: #{tpu_custom_call.1} parent=11 // pred_check
          %p224 = pneg %p168
        $region34: #{tpu_custom_call.1} parent=11 // pred_check_branch
          %226 = sbr.rel (%p224) target = $region36
        $region35: #{tpu_custom_call.1} parent=11 // pred_region
          _
        $region36: #{tpu_custom_call.1} parent=11 // pred_fallthru
          _
      $region12: #{tpu_custom_call.1} parent=5 // pred_fallthru
        _
      %p227 = scmp.lt.s32.totalorder %s16, 2
      // Predicated region
      $region37: #{tpu_custom_call.1} parent=5 // pred_check
        %p228 = pneg %p227
      $region38: #{tpu_custom_call.1} parent=5 // pred_check_branch
        %230 = sbr.rel (%p228) target = $region40
      $region39: #{tpu_custom_call.1} parent=5 // pred_region
        // Predicated region
        $region41: #{tpu_custom_call.1} parent=39 // pred_check
          %p231 = pneg %p36
        $region42: #{tpu_custom_call.1} parent=39 // pred_check_branch
          %233 = sbr.rel (%p231) target = $region44
        $region43: #{tpu_custom_call.1} parent=39 // pred_region
          %s234 = sand.u32 %s26, 1
          %s235 = sand.u32 %s26, 1
          %s236 = smul.addr %s235, 16
          %s237 = scalar_lea.vmem [#allocation2], %s236
          %s238 = smul.addr %s16, 8
          %s239 = scalar_lea.vmem %s0, %s238
          // Predicated region
          $region45: #{tpu_custom_call.1} parent=43 // pred_check
            _
          $region46: #{tpu_custom_call.1} parent=43 // pred_check_branch
            %241 = sbr.rel (0) target = $region48
          $region47: #{tpu_custom_call.1} parent=43 // pred_region
            // Predicated region
            $region49: #{tpu_custom_call.1} parent=47 // pred_check
              _
            $region50: #{tpu_custom_call.1} parent=47 // pred_check_branch
              %243 = sbr.rel (0) target = $region52
            $region51: #{tpu_custom_call.1} parent=47 // pred_region
              // Predicated region
              $region64: #{tpu_custom_call.1} parent=51 // pred_check
                _
              $region65: #{tpu_custom_call.1} parent=51 // pred_check_branch
                %260 = sbr.rel (0) target = $region67
              $region66: #{tpu_custom_call.1} parent=51 // pred_region
                loop: start=0, step=1, limit=1
                $region68: #{tpu_custom_call.1} parent=66 // loop_pre_header
                  _
                $region69: #{tpu_custom_call.1} parent=66 // loop_header
                  %s262 = sphi 0, %s266
                  %p263 = scmp.ge.s32.totalorder %s262, 1
                  %s267 = sphi %s239, %s239
                  %s268 = sphi %s237, %s237
                $region70: #{tpu_custom_call.1} parent=66 // loop_header_branch
                  %265 = sbr.rel (%p263) target = $region74
                $region71: #{tpu_custom_call.1} parent=66 // loop_body
                  %v269 = vld [vmem:[%s267] sm:$0xff]
                  %270 = vst [vmem:[%s268] sm:$0xff] %v269
                  %v271 = vld [vmem:[%s267 + $0x10] sm:$0xff]
                  %272 = vst [vmem:[%s268 + $0x8] sm:$0xff] %v271
                $region72: #{tpu_custom_call.1} parent=66 // loop_footer
                  %s266 = sadd.s32 1, %s262
                $region73: #{tpu_custom_call.1} parent=66 // loop_footer_branch
                  %261 = sbr.rel target = $region69
                $region74: #{tpu_custom_call.1} parent=66 // loop_exit
                  _
              $region67: #{tpu_custom_call.1} parent=51 // pred_fallthru
                _
              // Predicated region
              $region75: #{tpu_custom_call.1} parent=51 // pred_check
                _
              $region76: #{tpu_custom_call.1} parent=51 // pred_check_branch
                %274 = sbr.rel target = $region78
              $region77: #{tpu_custom_call.1} parent=51 // pred_region
                _
              $region78: #{tpu_custom_call.1} parent=51 // pred_fallthru
                _
            $region52: #{tpu_custom_call.1} parent=47 // pred_fallthru
              _
            // Predicated region
            $region53: #{tpu_custom_call.1} parent=47 // pred_check
              _
            $region54: #{tpu_custom_call.1} parent=47 // pred_check_branch
              %245 = sbr.rel target = $region56
            $region55: #{tpu_custom_call.1} parent=47 // pred_region
              loop: start=0, step=1, limit=1
              $region57: #{tpu_custom_call.1} parent=55 // loop_pre_header
                _
              $region58: #{tpu_custom_call.1} parent=55 // loop_header
                %s248 = sphi 0, %s252
                %p249 = scmp.ge.s32.totalorder %s248, 1
                %s253 = sphi %s239, %s239
                %s254 = sphi %s237, %s237
              $region59: #{tpu_custom_call.1} parent=55 // loop_header_branch
                %251 = sbr.rel (%p249) target = $region63
              $region60: #{tpu_custom_call.1} parent=55 // loop_body
                %v255 = vld [vmem:[%s253] sm:$0xff]
                %256 = vst [vmem:[%s254] sm:$0xff] %v255
                %v257 = vld [vmem:[%s253 + $0x10] sm:$0xff]
                %258 = vst [vmem:[%s254 + $0x8] sm:$0xff] %v257
              $region61: #{tpu_custom_call.1} parent=55 // loop_footer
                %s252 = sadd.s32 1, %s248
              $region62: #{tpu_custom_call.1} parent=55 // loop_footer_branch
                %247 = sbr.rel target = $region58
              $region63: #{tpu_custom_call.1} parent=55 // loop_exit
                _
            $region56: #{tpu_custom_call.1} parent=47 // pred_fallthru
              _
          $region48: #{tpu_custom_call.1} parent=43 // pred_fallthru
            _
          %275 = vnop
        $region44: #{tpu_custom_call.1} parent=39 // pred_fallthru
          _
      $region40: #{tpu_custom_call.1} parent=5 // pred_fallthru
        _
      %p276 = scmp.le.s32.totalorder 1, %s16
      %p277 = scmp.lt.s32.totalorder %s16, 3
      %p278 = pnand %p276, %p277
      %p279 = pneg %p278
      // Predicated region
      $region79: #{tpu_custom_call.1} parent=5 // pred_check
        _
      $region80: #{tpu_custom_call.1} parent=5 // pred_check_branch
        %281 = sbr.rel (%p278) target = $region82
      $region81: #{tpu_custom_call.1} parent=5 // pred_region
        %s282 = ssub.s32 %s16, 1
        %s283 = sand.u32 %s29, 1
        %s284 = sand.u32 %s29, 1
        %s285 = smul.addr %s284, 16
        %s286 = scalar_lea.vmem [#allocation2], %s285
        // Predicated region
        $region83: #{tpu_custom_call.1} parent=81 // pred_check
          %p287 = pneg %p42
        $region84: #{tpu_custom_call.1} parent=81 // pred_check_branch
          %289 = sbr.rel (%p287) target = $region86
        $region85: #{tpu_custom_call.1} parent=81 // pred_region
          _
        $region86: #{tpu_custom_call.1} parent=81 // pred_fallthru
          _
        %s290 = sand.u32 %s29, 1
        %s291 = sand.u32 %s29, 1
        %s292 = smul.addr %s291, 16
        %s293 = scalar_lea.vmem [#allocation2], %s292
        %p294 = pneg %p42
        %p295 = pneg %p39
        %p296 = pneg %p63
        %p297 = pneg %p60
        %p298 = pneg %p84
        %p299 = pneg %p81
        %p300 = pneg %p105
        %p301 = pneg %p102
        %p302 = pneg %p126
        %p303 = pneg %p123
        %p304 = pneg %p147
        %p305 = pneg %p144
        %p306 = pneg %p168
        %p307 = pneg %p165
        %p308 = pneg %p194
        %p309 = pneg %p191
        %s310 = sand.u32 %s181, 1
        %s311 = scalar_lea.sflag [#allocation4], %s310
        %s312 = sand.u32 %s181, 1
        %s313 = smul.addr %s312, 32
        %s314 = scalar_lea.vmem [#allocation3], %s313
        %v315 = vld [vmem:[%s286] sm:$0xff]
        %v316 = vld [vmem:[%s286 + $0x8] sm:$0xff]
        %v317 = vld [vmem:[%s1] sm:$0xff]
        %v318 = vld [vmem:[%s1 + $0x8] sm:$0xff]
        %v319 = vld [vmem:[%s1 + $0x10] sm:$0xff]
        %v320 = vld [vmem:[%s1 + $0x18] sm:$0xff]
        %v321 = vld [vmem:[%s1 + $0x20] sm:$0xff]
        %v322 = vld [vmem:[%s1 + $0x28] sm:$0xff]
        %v323 = vld [vmem:[%s1 + $0x30] sm:$0xff]
        %v324 = vld [vmem:[%s1 + $0x38] sm:$0xff]
        %v325 = vld [vmem:[%s2] sm:$0xff]
        %v326 = vld [vmem:[%s2 + $0x8] sm:$0xff]
        %v327 = vld [vmem:[%s2 + $0x10] sm:$0xff]
        %v328 = vld [vmem:[%s2 + $0x18] sm:$0xff]
        %v329 = vld [vmem:[%s2 + $0x20] sm:$0xff]
        %v330 = vld [vmem:[%s2 + $0x28] sm:$0xff]
        %v331 = vld [vmem:[%s2 + $0x30] sm:$0xff]
        %v332 = vld [vmem:[%s2 + $0x38] sm:$0xff]
        %334 = vset.pattern.permute.xlu0 0
        %335 = vperm.xlu0 %334, %v325
        %v336 = vpop.permute.xlu0 %335
        %339 = vset.pattern.permute.xlu0 0
        %340 = vperm.xlu0 %339, %v326
        %v341 = vpop.permute.xlu0 %340
        %344 = vset.pattern.permute.xlu0 0
        %345 = vperm.xlu0 %344, %v327
        %v346 = vpop.permute.xlu0 %345
        %349 = vset.pattern.permute.xlu0 0
        %350 = vperm.xlu0 %349, %v328
        %v351 = vpop.permute.xlu0 %350
        %354 = vset.pattern.permute.xlu0 0
        %355 = vperm.xlu0 %354, %v329
        %v356 = vpop.permute.xlu0 %355
        %359 = vset.pattern.permute.xlu0 0
        %360 = vperm.xlu0 %359, %v330
        %v361 = vpop.permute.xlu0 %360
        %364 = vset.pattern.permute.xlu0 0
        %365 = vperm.xlu0 %364, %v331
        %v366 = vpop.permute.xlu0 %365
        %369 = vset.pattern.permute.xlu0 0
        %370 = vperm.xlu0 %369, %v332
        %v371 = vpop.permute.xlu0 %370
        %vm373 = vcmask 130048
        %v375 = vsel %vm373, %v317, 0
        %v378 = vsel %vm373, %v318, 0
        %v381 = vsel %vm373, %v319, 0
        %v384 = vsel %vm373, %v320, 0
        %v387 = vsel %vm373, %v321, 0
        %v390 = vsel %vm373, %v322, 0
        %v393 = vsel %vm373, %v323, 0
        %v396 = vsel %vm373, %v324, 0
        %398 = vmatprep.subr.mxu0 0.0
        %399 = vmatpush1.msra.mxu0 %v315
        %400 = vmatprep.subr.mxu0 0.0
        %401 = vmatpush1.msra.mxu0 %v316
        %402 = vmatprep.subr.mxu0 0.0
        %403 = vmatpush1.msra.mxu0 0.0
        %404 = vmatprep.subr.mxu0 0.0
        %405 = vmatpush1.msra.mxu0 0.0
        %406 = vmatprep.subr.mxu0 0.0
        %407 = vmatpush1.msra.mxu0 0.0
        %408 = vmatprep.subr.mxu0 0.0
        %409 = vmatpush1.msra.mxu0 0.0
        %410 = vmatprep.subr.mxu0 0.0
        %411 = vmatpush1.msra.mxu0 0.0
        %412 = vmatprep.subr.mxu0 0.0
        %413 = vmatpush1.msra.mxu0 0.0
        %414 = vmatprep.subr.mxu0 0.0
        %415 = vmatpush1.msra.mxu0 0.0
        %416 = vmatprep.subr.mxu0 0.0
        %417 = vmatpush1.msra.mxu0 0.0
        %418 = vmatprep.subr.mxu0 0.0
        %419 = vmatpush1.msra.mxu0 0.0
        %420 = vmatprep.subr.mxu0 0.0
        %421 = vmatpush1.msra.mxu0 0.0
        %422 = vmatprep.subr.mxu0 0.0
        %423 = vmatpush1.msra.mxu0 0.0
        %424 = vmatprep.subr.mxu0 0.0
        %425 = vmatpush1.msra.mxu0 0.0
        %426 = vmatprep.subr.mxu0 0.0
        %427 = vmatpush1.msra.mxu0 0.0
        %428 = vmatprep.subr.mxu0 0.0
        %429 = vmatpush1.msra.mxu0 0.0
        %430 = vmatprep.subr.mxu0 0.0
        %431 = vmatpush1.msra.mxu0 0.0
        %432 = vmatprep.subr.mxu0 0.0
        %433 = vmatpush1.msra.mxu0 0.0
        %434 = vmatprep.subr.mxu0 0.0
        %435 = vmatpush1.msra.mxu0 0.0
        %436 = vmatprep.subr.mxu0 0.0
        %437 = vmatpush1.msra.mxu0 0.0
        %438 = vmatprep.subr.mxu0 0.0
        %439 = vmatpush1.msra.mxu0 0.0
        %440 = vmatprep.subr.mxu0 0.0
        %441 = vmatpush1.msra.mxu0 0.0
        %442 = vmatprep.subr.mxu0 0.0
        %443 = vmatpush1.msra.mxu0 0.0
        %444 = vmatprep.subr.mxu0 0.0
        %445 = vmatpush1.msra.mxu0 0.0
        %446 = vmatprep.subr.mxu0 0.0
        %447 = vmatpush1.msra.mxu0 0.0
        %448 = vmatprep.subr.mxu0 0.0
        %449 = vmatpush1.msra.mxu0 0.0
        %450 = vmatprep.subr.mxu0 0.0
        %451 = vmatpush1.msra.mxu0 0.0
        %452 = vmatprep.subr.mxu0 0.0
        %453 = vmatpush1.msra.mxu0 0.0
        %454 = vmatprep.subr.mxu0 0.0
        %455 = vmatpush1.msra.mxu0 0.0
        %456 = vmatprep.subr.mxu0 0.0
        %457 = vmatpush1.msra.mxu0 0.0
        %458 = vmatprep.subr.mxu0 0.0
        %459 = vmatpush1.msra.mxu0 0.0
        %460 = vmatprep.subr.mxu0 0.0
        %461 = vmatpush1.msra.mxu0 0.0
        %462 = vmatprep.mubr.f32.mxu0 0.0
        %463 = vmatmul.mubr.f32.gmra.mrb[0].mxu0 %v375
        %v464 = vpop.f32.mrb[0].mxu0
        %v465 = vadd.f32 %v336, %v464
        %v466 = vpop.f32.mrb[0].mxu0
        %467 = vmatprep.mubr.f32.mxu0 0.0
        %468 = vmatmul.mubr.f32.gmra.mrb[0].mxu0 %v378
        %v469 = vpop.f32.mrb[0].mxu0
        %v470 = vadd.f32 %v341, %v469
        %v471 = vpop.f32.mrb[0].mxu0
        %472 = vmatprep.mubr.f32.mxu0 0.0
        %473 = vmatmul.mubr.f32.gmra.mrb[0].mxu0 %v381
        %v474 = vpop.f32.mrb[0].mxu0
        %v475 = vadd.f32 %v346, %v474
        %v476 = vpop.f32.mrb[0].mxu0
        %477 = vmatprep.mubr.f32.mxu0 0.0
        %478 = vmatmul.mubr.f32.gmra.mrb[0].mxu0 %v384
        %v479 = vpop.f32.mrb[0].mxu0
        %v480 = vadd.f32 %v351, %v479
        %v481 = vpop.f32.mrb[0].mxu0
        %482 = vmatprep.mubr.f32.mxu0 0.0
        %483 = vmatmul.mubr.f32.gmra.mrb[0].mxu0 %v387
        %v484 = vpop.f32.mrb[0].mxu0
        %v485 = vadd.f32 %v356, %v484
        %v486 = vpop.f32.mrb[0].mxu0
        %487 = vmatprep.mubr.f32.mxu0 0.0
        %488 = vmatmul.mubr.f32.gmra.mrb[0].mxu0 %v390
        %v489 = vpop.f32.mrb[0].mxu0
        %v490 = vadd.f32 %v361, %v489
        %v491 = vpop.f32.mrb[0].mxu0
        %492 = vmatprep.mubr.f32.mxu0 0.0
        %493 = vmatmul.mubr.f32.gmra.mrb[0].mxu0 %v393
        %v494 = vpop.f32.mrb[0].mxu0
        %v495 = vadd.f32 %v366, %v494
        %v496 = vpop.f32.mrb[0].mxu0
        %497 = vmatprep.mubr.f32.mxu0 0.0
        %498 = vmatmul.mubr.f32.gmra.mrb[0].mxu0 %v396
        %v499 = vpop.f32.mrb[0].mxu0
        %v500 = vadd.f32 %v371, %v499
        %v501 = vpop.f32.mrb[0].mxu0
        %502 = vdwg.mxu0
        %v503 = vmax.f32 %v465, 0.0
        %v504 = vmax.f32 %v470, 0.0
        %v505 = vmax.f32 %v475, 0.0
        %v506 = vmax.f32 %v480, 0.0
        %v507 = vmax.f32 %v485, 0.0
        %v508 = vmax.f32 %v490, 0.0
        %v509 = vmax.f32 %v495, 0.0
        %v510 = vmax.f32 %v500, 0.0
        %v511 = vld [vmem:[%s3] sm:$0xff]
        %v512 = vld [vmem:[%s3 + $0x8] sm:$0xff]
        %v513 = vld [vmem:[%s3 + $0x10] sm:$0xff]
        %v514 = vld [vmem:[%s3 + $0x18] sm:$0xff]
        %v515 = vld [vmem:[%s4] sm:$0xff]
        %v516 = vld [vmem:[%s4 + $0x8] sm:$0xff]
        %v517 = vld [vmem:[%s4 + $0x10] sm:$0xff]
        %v518 = vld [vmem:[%s4 + $0x18] sm:$0xff]
        %520 = vset.pattern.permute.xlu0 0
        %521 = vperm.xlu0 %520, %v515
        %v522 = vpop.permute.xlu0 %521
        %525 = vset.pattern.permute.xlu0 0
        %526 = vperm.xlu0 %525, %v516
        %v527 = vpop.permute.xlu0 %526
        %530 = vset.pattern.permute.xlu0 0
        %531 = vperm.xlu0 %530, %v517
        %v532 = vpop.permute.xlu0 %531
        %535 = vset.pattern.permute.xlu0 0
        %536 = vperm.xlu0 %535, %v518
        %v537 = vpop.permute.xlu0 %536
        %vm539 = vcmask 523264
        %v541 = vsel %vm539, %v511, 0
        %v544 = vsel %vm539, %v512, 0
        %v547 = vsel %vm539, %v513, 0
        %v550 = vsel %vm539, %v514, 0
        %552 = vmatprep.subr.mxu0 0.0
        %553 = vmatpush1.msra.mxu0 %v503
        %554 = vmatprep.subr.mxu0 0.0
        %555 = vmatpush1.msra.mxu0 %v504
        %556 = vmatprep.subr.mxu0 0.0
        %557 = vmatpush1.msra.mxu0 %v505
        %558 = vmatprep.subr.mxu0 0.0
        %559 = vmatpush1.msra.mxu0 %v506
        %560 = vmatprep.subr.mxu0 0.0
        %561 = vmatpush1.msra.mxu0 %v507
        %562 = vmatprep.subr.mxu0 0.0
        %563 = vmatpush1.msra.mxu0 %v508
        %564 = vmatprep.subr.mxu0 0.0
        %565 = vmatpush1.msra.mxu0 %v509
        %566 = vmatprep.subr.mxu0 0.0
        %567 = vmatpush1.msra.mxu0 %v510
        %568 = vmatprep.subr.mxu0 0.0
        %569 = vmatpush1.msra.mxu0 0.0
        %570 = vmatprep.subr.mxu0 0.0
        %571 = vmatpush1.msra.mxu0 0.0
        %572 = vmatprep.subr.mxu0 0.0
        %573 = vmatpush1.msra.mxu0 0.0
        %574 = vmatprep.subr.mxu0 0.0
        %575 = vmatpush1.msra.mxu0 0.0
        %576 = vmatprep.subr.mxu0 0.0
        %577 = vmatpush1.msra.mxu0 0.0
        %578 = vmatprep.subr.mxu0 0.0
        %579 = vmatpush1.msra.mxu0 0.0
        %580 = vmatprep.subr.mxu0 0.0
        %581 = vmatpush1.msra.mxu0 0.0
        %582 = vmatprep.subr.mxu0 0.0
        %583 = vmatpush1.msra.mxu0 0.0
        %584 = vmatprep.subr.mxu0 0.0
        %585 = vmatpush1.msra.mxu0 0.0
        %586 = vmatprep.subr.mxu0 0.0
        %587 = vmatpush1.msra.mxu0 0.0
        %588 = vmatprep.subr.mxu0 0.0
        %589 = vmatpush1.msra.mxu0 0.0
        %590 = vmatprep.subr.mxu0 0.0
        %591 = vmatpush1.msra.mxu0 0.0
        %592 = vmatprep.subr.mxu0 0.0
        %593 = vmatpush1.msra.mxu0 0.0
        %594 = vmatprep.subr.mxu0 0.0
        %595 = vmatpush1.msra.mxu0 0.0
        %596 = vmatprep.subr.mxu0 0.0
        %597 = vmatpush1.msra.mxu0 0.0
        %598 = vmatprep.subr.mxu0 0.0
        %599 = vmatpush1.msra.mxu0 0.0
        %600 = vmatprep.subr.mxu0 0.0
        %601 = vmatpush1.msra.mxu0 0.0
        %602 = vmatprep.subr.mxu0 0.0
        %603 = vmatpush1.msra.mxu0 0.0
        %604 = vmatprep.subr.mxu0 0.0
        %605 = vmatpush1.msra.mxu0 0.0
        %606 = vmatprep.subr.mxu0 0.0
        %607 = vmatpush1.msra.mxu0 0.0
        %608 = vmatprep.subr.mxu0 0.0
        %609 = vmatpush1.msra.mxu0 0.0
        %610 = vmatprep.subr.mxu0 0.0
        %611 = vmatpush1.msra.mxu0 0.0
        %612 = vmatprep.subr.mxu0 0.0
        %613 = vmatpush1.msra.mxu0 0.0
        %614 = vmatprep.subr.mxu0 0.0
        %615 = vmatpush1.msra.mxu0 0.0
        %616 = vmatprep.mubr.f32.mxu0 0.0
        %617 = vmatmul.mubr.f32.gmra.mrb[0].mxu0 %v541
        %v618 = vpop.f32.mrb[0].mxu0
        %v619 = vadd.f32 %v522, %v618
        %v620 = vpop.f32.mrb[0].mxu0
        %621 = vmatprep.mubr.f32.mxu0 0.0
        %622 = vmatmul.mubr.f32.gmra.mrb[0].mxu0 %v544
        %v623 = vpop.f32.mrb[0].mxu0
        %v624 = vadd.f32 %v527, %v623
        %v625 = vpop.f32.mrb[0].mxu0
        %626 = vmatprep.mubr.f32.mxu0 0.0
        %627 = vmatmul.mubr.f32.gmra.mrb[0].mxu0 %v547
        %v628 = vpop.f32.mrb[0].mxu0
        %v629 = vadd.f32 %v532, %v628
        %v630 = vpop.f32.mrb[0].mxu0
        %631 = vmatprep.mubr.f32.mxu0 0.0
        %632 = vmatmul.mubr.f32.gmra.mrb[0].mxu0 %v550
        %v633 = vpop.f32.mrb[0].mxu0
        %v634 = vadd.f32 %v537, %v633
        %v635 = vpop.f32.mrb[0].mxu0
        %636 = vdwg.mxu0
        %v637 = vadd.f32 %v619, %v624
        %v638 = vadd.f32 %v637, %v629
        %v639 = vadd.f32 %v638, %v634
        %v640 = vrot.slane %v639, 4
        %v641 = vadd.f32 %v639, %v640
        %v642 = vrot.slane %v641, 2
        %v643 = vadd.f32 %v641, %v642
        %v644 = vrot.slane %v643, 1
        %v645 = vadd.f32 %v643, %v644
        %v646 = vmul.f32 %v645, 0.03125
        %v647 = vsub.f32 %v619, %v646
        %v648 = vsub.f32 %v624, %v646
        %v649 = vsub.f32 %v629, %v646
        %v650 = vsub.f32 %v634, %v646
        %v651 = vmul.f32 %v647, %v647
        %v652 = vmul.f32 %v648, %v648
        %v653 = vmul.f32 %v649, %v649
        %v654 = vmul.f32 %v650, %v650
        %v655 = vadd.f32 %v651, %v652
        %v656 = vadd.f32 %v655, %v653
        %v657 = vadd.f32 %v656, %v654
        %v658 = vrot.slane %v657, 4
        %v659 = vadd.f32 %v657, %v658
        %v660 = vrot.slane %v659, 2
        %v661 = vadd.f32 %v659, %v660
        %v662 = vrot.slane %v661, 1
        %v663 = vadd.f32 %v661, %v662
        %v664 = vmul.f32 %v663, 0.03125
        %v665 = vadd.f32 %v664, 1e-05
        %v666 = vrsqrt.pop %v665
        %v667 = vmul.f32 %v647, %v666
        %v668 = vmul.f32 %v648, %v666
        %v669 = vmul.f32 %v649, %v666
        %v670 = vmul.f32 %v650, %v666
        %v671 = vld [vmem:[%s5] sm:$0xff]
        %v672 = vld [vmem:[%s5 + $0x8] sm:$0xff]
        %v673 = vld [vmem:[%s5 + $0x10] sm:$0xff]
        %v674 = vld [vmem:[%s5 + $0x18] sm:$0xff]
        %676 = vset.pattern.permute.xlu0 0
        %677 = vperm.xlu0 %676, %v671
        %v678 = vpop.permute.xlu0 %677
        %681 = vset.pattern.permute.xlu0 0
        %682 = vperm.xlu0 %681, %v672
        %v683 = vpop.permute.xlu0 %682
        %686 = vset.pattern.permute.xlu0 0
        %687 = vperm.xlu0 %686, %v673
        %v688 = vpop.permute.xlu0 %687
        %691 = vset.pattern.permute.xlu0 0
        %692 = vperm.xlu0 %691, %v674
        %v693 = vpop.permute.xlu0 %692
        %v695 = vmul.f32 %v667, %v678
        %v696 = vmul.f32 %v668, %v683
        %v697 = vmul.f32 %v669, %v688
        %v698 = vmul.f32 %v670, %v693
        %v699 = vld [vmem:[%s6] sm:$0xff]
        %v700 = vld [vmem:[%s6 + $0x8] sm:$0xff]
        %v701 = vld [vmem:[%s6 + $0x10] sm:$0xff]
        %v702 = vld [vmem:[%s6 + $0x18] sm:$0xff]
        %704 = vset.pattern.permute.xlu0 0
        %705 = vperm.xlu0 %704, %v699
        %v706 = vpop.permute.xlu0 %705
        %709 = vset.pattern.permute.xlu0 0
        %710 = vperm.xlu0 %709, %v700
        %v711 = vpop.permute.xlu0 %710
        %714 = vset.pattern.permute.xlu0 0
        %715 = vperm.xlu0 %714, %v701
        %v716 = vpop.permute.xlu0 %715
        %719 = vset.pattern.permute.xlu0 0
        %720 = vperm.xlu0 %719, %v702
        %v721 = vpop.permute.xlu0 %720
        %v723 = vadd.f32 %v695, %v706
        %v724 = vadd.f32 %v696, %v711
        %v725 = vadd.f32 %v697, %v716
        %v726 = vadd.f32 %v698, %v721
        %v727 = vtanh.pop %v723
        %v728 = vtanh.pop %v724
        %v729 = vtanh.pop %v725
        %v730 = vtanh.pop %v726
        %731 = vst [vmem:[%s314] sm:$0xff] %v727
        %732 = vst [vmem:[%s314 + $0x8] sm:$0xff] %v728
        %733 = vst [vmem:[%s314 + $0x10] sm:$0xff] %v729
        %734 = vst [vmem:[%s314 + $0x18] sm:$0xff] %v730
        %s735 = sand.u32 %s181, 1
        %s736 = scalar_lea.sflag [#allocation4], %s735
        %s737 = sand.u32 %s181, 1
        %s738 = smul.addr %s737, 32
        %s739 = scalar_lea.vmem [#allocation3], %s738
        // Predicated region
        $region87: #{tpu_custom_call.1} parent=81 // pred_check
          %p740 = pneg %p191
        $region88: #{tpu_custom_call.1} parent=81 // pred_check_branch
          %742 = sbr.rel (%p740) target = $region90
        $region89: #{tpu_custom_call.1} parent=81 // pred_region
          %s744 = ssub.s32 512, 512
          %745 = vsyncadd %s736, %s744
          %s746 = smul.addr %s21, 128
          %s747 = scalar_lea.hbm %s7, %s746
          %s748 = sshll.u32 %s739, 4
          %s749 = int_to_ptr.vmem [resolvable:$true] %s748
          %754 = dma.vmem_to_hbm [thread:$0]  %s749, 512, %s747, %s736, 128, 256, 8
        $region90: #{tpu_custom_call.1} parent=81 // pred_fallthru
          _
      $region82: #{tpu_custom_call.1} parent=5 // pred_fallthru
        _
      %p755 = scmp.le.s32.totalorder 2, %s16
      // Predicated region
      $region91: #{tpu_custom_call.1} parent=5 // pred_check
        %p756 = pneg %p755
      $region92: #{tpu_custom_call.1} parent=5 // pred_check_branch
        %758 = sbr.rel (%p756) target = $region94
      $region93: #{tpu_custom_call.1} parent=5 // pred_region
        %s759 = ssub.s32 %s16, 2
        // Predicated region
        $region95: #{tpu_custom_call.1} parent=93 // pred_check
          %p760 = pneg %p197
        $region96: #{tpu_custom_call.1} parent=93 // pred_check_branch
          %762 = sbr.rel (%p760) target = $region98
        $region97: #{tpu_custom_call.1} parent=93 // pred_region
          %s763 = sand.u32 %s182, 1
          %s764 = scalar_lea.sflag [#allocation4], %s763
          %s765 = sand.u32 %s182, 1
          %s766 = smul.addr %s765, 32
          %s767 = scalar_lea.vmem [#allocation3], %s766
          %768 = dma.done %s764, 512
        $region98: #{tpu_custom_call.1} parent=93 // pred_fallthru
          _
      $region94: #{tpu_custom_call.1} parent=5 // pred_fallthru
        _
    $region6: #{tpu_custom_call.1} parent=1 // loop_footer
      %s20 = sadd.s32 1, %s16
    $region7: #{tpu_custom_call.1} parent=1 // loop_footer_branch
      %15 = sbr.rel target = $region3
    $region8: #{tpu_custom_call.1} parent=1 // loop_exit
      _
    %769 = vsyncpa [#allocation4], 1
    %s770 = scalar_lea.sflag [#allocation4], 1
    %771 = vsyncpa %s770, 1

</llo_original>
